<compile_context>
chip_gen: v7x
topology: tpu7x:2x2x1
jax: 0.10.0
libtpu: 0.0.40
codegen_flags: <defaults>
</compile_context>

<pallas_src>
import functools

import jax
import jax.numpy as jnp
from jax.experimental import pallas as pl
from jax.experimental.pallas import tpu as pltpu


def policy_kernel(xt_ref, w1_ref, b1_ref, w2_ref, b2_ref, out_ref):
    # Hidden layer: (hidden, in_dim) @ (in_dim, tb) -> (hidden, tb); f32 MXU accumulate.
    h = jnp.dot(w1_ref[...], xt_ref[...], preferred_element_type=jnp.float32) + b1_ref[...]
    h = jnp.maximum(h, 0.0)

    # Output layer: (out_dim, hidden) @ (hidden, tb) -> (out_dim, tb).
    logits = jnp.dot(w2_ref[...], h, preferred_element_type=jnp.float32) + b2_ref[...]

    # Numerically stable softmax over the action axis (axis 0 = 4 sublanes; the batch
    # stays on the 128 lanes, so the elementwise work uses every lane of every vreg).
    m = jnp.max(logits, axis=0, keepdims=True)
    e = jnp.exp(logits - m)
    denom = jnp.sum(e, axis=0, keepdims=True)
    # Exact reciprocal (approx=False): probabilities sum to 1 to f32 precision, which
    # matters for downstream categorical sampling / log-prob computation in REINFORCE.
    out_ref[...] = (e * pl.reciprocal(denom)).astype(out_ref.dtype)


def _round_up(x, m):
    return ((x + m - 1) // m) * m


@functools.partial(jax.jit, static_argnames=("block_batch", "core_parallel"))
def reinforce_policy_forward(x, w1, b1, w2, b2, *, block_batch=8192, core_parallel=False):
    """Action probabilities for a batch of observations.

    x:  (B, input_dim) f32            (PyTorch (N, features) layout)
    w1: (hidden, input_dim) f32       (PyTorch nn.Linear weight layout, out x in)
    b1: (hidden,) f32
    w2: (output_dim, hidden) f32
    b2: (output_dim,) f32
    returns: (B, output_dim) f32 probabilities (rows sum to 1).

    core_parallel=True uses pltpu.CORE_PARALLEL on the batch grid axis (v7x: splits the
    batch across both TensorCores); default "parallel" is the safe choice everywhere.
    """
    B, in_dim = x.shape
    hidden = w1.shape[0]
    out_dim = w2.shape[0]

    # Batch tile: multiple of 128 (lane granularity in the transposed layout), capped at
    # block_batch. At the default 8192 the per-step VMEM footprint (x tile 2x256 KiB,
    # hidden activation ~4 MiB, out tile 2x256 KiB, weights <0.3 MiB) stays well under
    # the 32 MiB scoped limit on every generation, including v7x's smaller VMEM.
    tb = _round_up(min(block_batch, _round_up(B, 128)), 128)
    Bp = _round_up(B, tb)

    # One materializing pass over x: pad the batch tail and transpose to the lane-dense
    # (in_dim, Bp) layout the kernel wants (pad + transpose fuse into the same copy).
    # Padded columns flow through a softmax of pure biases and are sliced off below.
    xt = jnp.pad(x, ((0, Bp - B), (0, 0))).T

    b1c = b1.reshape(hidden, 1)
    b2c = b2.reshape(out_dim, 1)

    grid = (Bp // tb,)
    dim_sem = (pltpu.CORE_PARALLEL,) if core_parallel else ("parallel",)

    # Advisory cost estimate so XLA schedules correctly around the custom call.
    flops = 2 * Bp * (in_dim * hidden + hidden * out_dim) + 6 * Bp * out_dim
    transcendentals = Bp * out_dim + Bp
    bytes_accessed = (
        xt.size * xt.dtype.itemsize
        + (w1.size + b1.size + w2.size + b2.size) * 4
        + Bp * out_dim * 4
    )

    out_t = pl.pallas_call(
        policy_kernel,
        out_shape=jax.ShapeDtypeStruct((out_dim, Bp), jnp.float32),
        grid_spec=pltpu.PrefetchScalarGridSpec(
            num_scalar_prefetch=0,
            grid=grid,
            in_specs=[
                # x^T: tiled along the (lane-dense) batch axis.
                pl.BlockSpec((in_dim, tb), lambda i: (0, i)),
                # Weights/biases: constant block index -> VMEM-resident across all steps.
                pl.BlockSpec((hidden, in_dim), lambda i: (0, 0)),
                pl.BlockSpec((hidden, 1), lambda i: (0, 0)),
                pl.BlockSpec((out_dim, hidden), lambda i: (0, 0)),
                pl.BlockSpec((out_dim, 1), lambda i: (0, 0)),
            ],
            # Lane-dense output: (out_dim, tb) block -> unmasked full-lane stores + dense writeback.
            out_specs=pl.BlockSpec((out_dim, tb), lambda i: (0, i)),
        ),
        compiler_params=pltpu.CompilerParams(
            dimension_semantics=dim_sem,
            vmem_limit_bytes=32 * 1024 * 1024,
        ),
        cost_estimate=pl.CostEstimate(
            flops=flops, transcendentals=transcendentals, bytes_accessed=bytes_accessed
        ),
    )(xt, w1, b1c, w2, b2c)

    # Back to the PyTorch (B, output_dim) interface; drop padded tail columns first.
    # (Callers that can consume (output_dim, B) directly should skip this transpose.)
    return out_t[:, :B].T


def init_params(key, input_dim, hidden_dim, output_dim):
    """PyTorch default nn.Linear init: U(+/-1/sqrt(fan_in)); weight stored (out, in)."""
    k1, k2, k3, k4 = jax.random.split(key, 4)
    bound1 = 1.0 / jnp.sqrt(input_dim)
    bound2 = 1.0 / jnp.sqrt(hidden_dim)
    w1 = jax.random.uniform(k1, (hidden_dim, input_dim), jnp.float32, -bound1, bound1)
    b1 = jax.random.uniform(k2, (hidden_dim,), jnp.float32, -bound1, bound1)
    w2 = jax.random.uniform(k3, (output_dim, hidden_dim), jnp.float32, -bound2, bound2)
    b2 = jax.random.uniform(k4, (output_dim,), jnp.float32, -bound2, bound2)
    return w1, b1, w2, b2


def _reference(x, w1, b1, w2, b2):
    h = jnp.maximum(x @ w1.T + b1, 0.0)
    return jax.nn.softmax(h @ w2.T + b2, axis=-1)


if __name__ == "__main__":
    # LunarLander-v3: observation dim = 8, action dim = 4.
    input_dim, hidden_dim, output_dim = 8, 128, 4

    key = jax.random.PRNGKey(0)
    kp, kx1, kx2, kx3 = jax.random.split(key, 4)
    w1, b1, w2, b2 = init_params(kp, input_dim, hidden_dim, output_dim)

    # Case 1: multi-step grid with a partially-padded tail tile (320 rows, 128-row tiles
    # -> grid=(3,)); weights stay VMEM-resident across the steps.
    x1 = jax.random.normal(kx1, (320, input_dim), dtype=jnp.float32)
    p1 = jax.block_until_ready(reinforce_policy_forward(x1, w1, b1, w2, b2, block_batch=128))
    r1 = _reference(x1, w1, b1, w2, b2)
    assert p1.shape == (320, output_dim)
    assert jnp.allclose(p1, r1, atol=5e-3, rtol=5e-3)
    assert jnp.allclose(jnp.sum(p1, axis=-1), 1.0, atol=1e-4)

    # Case 2: tiny batch (tail-only tile), default tile size.
    x2 = jax.random.normal(kx2, (10, input_dim), dtype=jnp.float32)
    p2 = jax.block_until_ready(reinforce_policy_forward(x2, w1, b1, w2, b2))
    r2 = _reference(x2, w1, b1, w2, b2)
    assert p2.shape == (10, output_dim)
    assert jnp.allclose(p2, r2, atol=5e-3, rtol=5e-3)
    assert jnp.allclose(jnp.sum(p2, axis=-1), 1.0, atol=1e-4)

    # Case 3: rollout-style batch exercising a large (4096-row) tile in a single step.
    x3 = jax.random.normal(kx3, (4096, input_dim), dtype=jnp.float32)
    p3 = jax.block_until_ready(reinforce_policy_forward(x3, w1, b1, w2, b2))
    r3 = _reference(x3, w1, b1, w2, b2)
    assert p3.shape == (4096, output_dim)
    assert jnp.allclose(p3, r3, atol=5e-3, rtol=5e-3)
    assert jnp.allclose(jnp.sum(p3, axis=-1), 1.0, atol=1e-4)

    print("KERNEL_OK")
</pallas_src>

<mosaic_0001>
module attributes {stable_mosaic.version = 11 : i64} {
  func.func @policy_kernel(%arg0: i32, %arg1: memref<8x128xf32, #tpu.memory_space<vmem>>, %arg2: memref<128x8xf32, #tpu.memory_space<vmem>>, %arg3: memref<128x1xf32, #tpu.memory_space<vmem>>, %arg4: memref<4x128xf32, #tpu.memory_space<vmem>>, %arg5: memref<4x1xf32, #tpu.memory_space<vmem>>, %arg6: memref<4x128xf32, #tpu.memory_space<vmem>>) attributes {dimension_semantics = [#tpu.dimension_semantics<parallel>], iteration_bounds = array<i64: 3>, scalar_prefetch = 0 : i64, scratch_operands = 0 : i64, tpu.core_type = #tpu.core_type<tc>, window_params = [{transform_indices = @transform_0, window_bounds = array<i64: 8, 128>}, {pipeline_mode = #tpu.pipeline_mode<synchronous>, transform_indices = @transform_1, window_bounds = array<i64: 128, 8>}, {pipeline_mode = #tpu.pipeline_mode<synchronous>, transform_indices = @transform_2, window_bounds = array<i64: 128, 1>}, {pipeline_mode = #tpu.pipeline_mode<synchronous>, transform_indices = @transform_3, window_bounds = array<i64: 4, 128>}, {pipeline_mode = #tpu.pipeline_mode<synchronous>, transform_indices = @transform_4, window_bounds = array<i64: 4, 1>}, {transform_indices = @transform_5, window_bounds = array<i64: 4, 128>}]} {
    %c0 = arith.constant 0 : index
    %c0_0 = arith.constant 0 : index
    %0 = vector.load %arg2[%c0, %c0_0] : memref<128x8xf32, #tpu.memory_space<vmem>>, vector<128x8xf32>
    %c0_1 = arith.constant 0 : index
    %c0_2 = arith.constant 0 : index
    %1 = vector.load %arg1[%c0_1, %c0_2] : memref<8x128xf32, #tpu.memory_space<vmem>>, vector<8x128xf32>
    %cst = arith.constant dense<0.000000e+00> : vector<128x128xf32>
    %2 = tpu.matmul %0, %1, %cst {dimension_numbers = #tpu.dot_dimension_numbers<[1], [0], [0], [1], [0, 0, 1, 1], [], []>} : vector<128x8xf32>, vector<8x128xf32>, vector<128x128xf32> -> vector<128x128xf32>
    %c0_3 = arith.constant 0 : index
    %c0_4 = arith.constant 0 : index
    %3 = vector.load %arg3[%c0_3, %c0_4] : memref<128x1xf32, #tpu.memory_space<vmem>>, vector<128x1xf32>
    %4 = vector.broadcast %3 : vector<128x1xf32> to vector<128x128xf32>
    %5 = arith.addf %2, %4 : vector<128x128xf32>
    %cst_5 = arith.constant 0.000000e+00 : f32
    %6 = vector.broadcast %cst_5 : f32 to vector<128x128xf32>
    %7 = arith.maximumf %5, %6 : vector<128x128xf32>
    %c0_6 = arith.constant 0 : index
    %c0_7 = arith.constant 0 : index
    %8 = vector.load %arg4[%c0_6, %c0_7] : memref<4x128xf32, #tpu.memory_space<vmem>>, vector<4x128xf32>
    %cst_8 = arith.constant dense<0.000000e+00> : vector<4x128xf32>
    %9 = tpu.matmul %8, %7, %cst_8 {dimension_numbers = #tpu.dot_dimension_numbers<[1], [0], [0], [1], [0, 0, 1, 1], [], []>} : vector<4x128xf32>, vector<128x128xf32>, vector<4x128xf32> -> vector<4x128xf32>
    %c0_9 = arith.constant 0 : index
    %c0_10 = arith.constant 0 : index
    %10 = vector.load %arg5[%c0_9, %c0_10] : memref<4x1xf32, #tpu.memory_space<vmem>>, vector<4x1xf32>
    %11 = vector.broadcast %10 : vector<4x1xf32> to vector<4x128xf32>
    %12 = arith.addf %9, %11 : vector<4x128xf32>
    %cst_11 = arith.constant dense<0xFF800000> : vector<128xf32>
    %13 = vector.multi_reduction <maximumf>, %12, %cst_11 [0] : vector<4x128xf32> to vector<128xf32>
    %14 = vector.shape_cast %13 : vector<128xf32> to vector<1x128xf32>
    %15 = vector.broadcast %14 : vector<1x128xf32> to vector<4x128xf32>
    %16 = arith.subf %12, %15 : vector<4x128xf32>
    %17 = math.exp %16 : vector<4x128xf32>
    %cst_12 = arith.constant dense<0.000000e+00> : vector<128xf32>
    %18 = vector.multi_reduction <add>, %17, %cst_12 [0] : vector<4x128xf32> to vector<128xf32>
    %19 = vector.shape_cast %18 : vector<128xf32> to vector<1x128xf32>
    %20 = tpu.reciprocal %19 : vector<1x128xf32> -> vector<1x128xf32>
    %21 = vector.broadcast %20 : vector<1x128xf32> to vector<4x128xf32>
    %22 = arith.mulf %17, %21 : vector<4x128xf32>
    %c0_13 = arith.constant 0 : index
    %c0_14 = arith.constant 0 : index
    %23 = vector.load %arg6[%c0_13, %c0_14] : memref<4x128xf32, #tpu.memory_space<vmem>>, vector<4x128xf32>
    tpu.vector_store %arg6[%c0_13, %c0_14], %22 {strides = array<i32>} : memref<4x128xf32, #tpu.memory_space<vmem>>, vector<4x128xf32>,
    return
  }
  func.func @transform_0(%arg0: i32) -> (i32, i32) {
    %c0_i32 = arith.constant 0 : i32
    %c0_i32_0 = arith.constant 0 : i32
    return %c0_i32, %arg0 : i32, i32
  }
  func.func @transform_1(%arg0: i32) -> (i32, i32) {
    %c0_i32 = arith.constant 0 : i32
    %c0_i32_0 = arith.constant 0 : i32
    %c0_i32_1 = arith.constant 0 : i32
    return %c0_i32, %c0_i32_0 : i32, i32
  }
  func.func @transform_2(%arg0: i32) -> (i32, i32) {
    %c0_i32 = arith.constant 0 : i32
    %c0_i32_0 = arith.constant 0 : i32
    %c0_i32_1 = arith.constant 0 : i32
    return %c0_i32, %c0_i32_0 : i32, i32
  }
  func.func @transform_3(%arg0: i32) -> (i32, i32) {
    %c0_i32 = arith.constant 0 : i32
    %c0_i32_0 = arith.constant 0 : i32
    %c0_i32_1 = arith.constant 0 : i32
    return %c0_i32, %c0_i32_0 : i32, i32
  }
  func.func @transform_4(%arg0: i32) -> (i32, i32) {
    %c0_i32 = arith.constant 0 : i32
    %c0_i32_0 = arith.constant 0 : i32
    %c0_i32_1 = arith.constant 0 : i32
    return %c0_i32, %c0_i32_0 : i32, i32
  }
  func.func @transform_5(%arg0: i32) -> (i32, i32) {
    %c0_i32 = arith.constant 0 : i32
    %c0_i32_0 = arith.constant 0 : i32
    return %c0_i32, %arg0 : i32, i32
  }
}

</mosaic_0001>

<llo_original>
// kernel: reinforce_policy_forward.1
$region0: #{reinforce_policy_forward.1}
  #allocation0 [shape = 'u32[]', space=smem, size = 0x4, offset = 0x4, fixed_abs, tag = 'smem constant byte address 0x4 - core index']
  #allocation1 [shape = 'u32[144,128]{1,0:T(1,128)}', space=vmem, size = 0x12000, scoped, tag = 'internal scratch']
  %s0 = inlined_call_operand.vmem [shape: f32[8,384], index: 0, kind: input, shape index: {}]
  %s1 = inlined_call_operand.vmem [shape: f32[128,8], index: 1, kind: input, shape index: {}]
  %s2 = inlined_call_operand.vmem [shape: f32[128,1], index: 2, kind: input, shape index: {}]
  %s3 = inlined_call_operand.vmem [shape: f32[4,128], index: 3, kind: input, shape index: {}]
  %s4 = inlined_call_operand.vmem [shape: f32[4,1], index: 4, kind: input, shape index: {}]
  %s5 = inlined_call_operand.vmem [shape: f32[4,384], index: 5, kind: output, shape index: {}]
  %s6 = sld [smem:[#allocation0]]
  $region53: #{reinforce_policy_forward.1} parent=0
    _
  %s8 = ssub.s32 1, %s6
  %s9 = scalar_select 0, %s8, %s6
  loop: start=0, step=1, limit=5
  $region2: #{reinforce_policy_forward.1} parent=0 // loop_pre_header
    _
  $region3: #{reinforce_policy_forward.1} parent=0 // loop_header
    %s11 = sphi 0, %s15
    %p12 = scmp.ge.s32.totalorder %s11, 5
    %s21 = sphi 0, %s23
    %s24 = sphi 0, %s21
    %s25 = sphi 0, %s24
    %s41 = sphi 0, %s25
    %s45 = sphi 0, %s45
    %s47 = sphi 0, %s45
    %s48 = sphi 0, %s47
    %s62 = sphi 0, %s48
    %s66 = sphi 0, %s66
    %s68 = sphi 0, %s66
    %s69 = sphi 0, %s68
    %s83 = sphi 0, %s69
    %s87 = sphi 0, %s87
    %s89 = sphi 0, %s87
    %s90 = sphi 0, %s89
    %s104 = sphi 0, %s90
    %s108 = sphi 0, %s108
    %s110 = sphi 0, %s108
    %s111 = sphi 0, %s110
    %s125 = sphi 0, %s111
    %s131 = sphi 0, %s133
    %s134 = sphi 0, %s131
    %s135 = sphi 0, %s134
    %s151 = sphi 0, %s135
  $region4: #{reinforce_policy_forward.1} parent=0 // loop_header_branch
    %14 = sbr.rel (%p12) target = $region8
  $region5: #{reinforce_policy_forward.1} parent=0 // loop_body
    %s16 = ssub.s32 %s11, 1
    %s17 = ssub.s32 %s11, 2
    %s18 = sadd.s32 %s11, 1
    %s19 = ssub.s32 %s11, %s18
    %p20 = scmp.eq.s32.totalorder %s19, 0
    %s22 = sadd.s32 %s21, 1
    %s23 = scalar_select %p20, %s21, %s22
    %p26 = pneg %p20
    %p27 = scmp.eq.s32.totalorder %s11, 2
    %p28 = por %p26, %p27
    %p29 = scmp.ne.s32.totalorder %s21, %s24
    %p30 = scmp.eq.s32.totalorder %s11, 0
    %p31 = por %p29, %p30
    %p32 = scmp.ne.s32.totalorder %s21, %s24
    %p33 = scmp.eq.s32.totalorder %s16, 2
    %p34 = por %p32, %p33
    %p35 = scmp.ne.s32.totalorder %s24, %s25
    %p36 = scmp.eq.s32.totalorder %s16, 0
    %p37 = por %p35, %p36
    %p38 = scmp.ne.s32.totalorder %s24, %s25
    %p39 = scmp.eq.s32.totalorder %s17, 2
    %p40 = por %p38, %p39
    %p42 = scmp.ne.s32.totalorder %s25, %s41
    %p43 = scmp.eq.s32.totalorder %s17, 0
    %p44 = por %p42, %p43
    %s46 = sadd.s32 %s45, 1
    %p49 = scmp.eq.s32.totalorder %s11, 2
    %p50 = scmp.ne.s32.totalorder %s45, %s47
    %p51 = scmp.eq.s32.totalorder %s11, 0
    %p52 = por %p50, %p51
    %p53 = scmp.ne.s32.totalorder %s45, %s47
    %p54 = scmp.eq.s32.totalorder %s16, 2
    %p55 = por %p53, %p54
    %p56 = scmp.ne.s32.totalorder %s47, %s48
    %p57 = scmp.eq.s32.totalorder %s16, 0
    %p58 = por %p56, %p57
    %p59 = scmp.ne.s32.totalorder %s47, %s48
    %p60 = scmp.eq.s32.totalorder %s17, 2
    %p61 = por %p59, %p60
    %p63 = scmp.ne.s32.totalorder %s48, %s62
    %p64 = scmp.eq.s32.totalorder %s17, 0
    %p65 = por %p63, %p64
    %s67 = sadd.s32 %s66, 1
    %p70 = scmp.eq.s32.totalorder %s11, 2
    %p71 = scmp.ne.s32.totalorder %s66, %s68
    %p72 = scmp.eq.s32.totalorder %s11, 0
    %p73 = por %p71, %p72
    %p74 = scmp.ne.s32.totalorder %s66, %s68
    %p75 = scmp.eq.s32.totalorder %s16, 2
    %p76 = por %p74, %p75
    %p77 = scmp.ne.s32.totalorder %s68, %s69
    %p78 = scmp.eq.s32.totalorder %s16, 0
    %p79 = por %p77, %p78
    %p80 = scmp.ne.s32.totalorder %s68, %s69
    %p81 = scmp.eq.s32.totalorder %s17, 2
    %p82 = por %p80, %p81
    %p84 = scmp.ne.s32.totalorder %s69, %s83
    %p85 = scmp.eq.s32.totalorder %s17, 0
    %p86 = por %p84, %p85
    %s88 = sadd.s32 %s87, 1
    %p91 = scmp.eq.s32.totalorder %s11, 2
    %p92 = scmp.ne.s32.totalorder %s87, %s89
    %p93 = scmp.eq.s32.totalorder %s11, 0
    %p94 = por %p92, %p93
    %p95 = scmp.ne.s32.totalorder %s87, %s89
    %p96 = scmp.eq.s32.totalorder %s16, 2
    %p97 = por %p95, %p96
    %p98 = scmp.ne.s32.totalorder %s89, %s90
    %p99 = scmp.eq.s32.totalorder %s16, 0
    %p100 = por %p98, %p99
    %p101 = scmp.ne.s32.totalorder %s89, %s90
    %p102 = scmp.eq.s32.totalorder %s17, 2
    %p103 = por %p101, %p102
    %p105 = scmp.ne.s32.totalorder %s90, %s104
    %p106 = scmp.eq.s32.totalorder %s17, 0
    %p107 = por %p105, %p106
    %s109 = sadd.s32 %s108, 1
    %p112 = scmp.eq.s32.totalorder %s11, 2
    %p113 = scmp.ne.s32.totalorder %s108, %s110
    %p114 = scmp.eq.s32.totalorder %s11, 0
    %p115 = por %p113, %p114
    %p116 = scmp.ne.s32.totalorder %s108, %s110
    %p117 = scmp.eq.s32.totalorder %s16, 2
    %p118 = por %p116, %p117
    %p119 = scmp.ne.s32.totalorder %s110, %s111
    %p120 = scmp.eq.s32.totalorder %s16, 0
    %p121 = por %p119, %p120
    %p122 = scmp.ne.s32.totalorder %s110, %s111
    %p123 = scmp.eq.s32.totalorder %s17, 2
    %p124 = por %p122, %p123
    %p126 = scmp.ne.s32.totalorder %s111, %s125
    %p127 = scmp.eq.s32.totalorder %s17, 0
    %p128 = por %p126, %p127
    %s129 = ssub.s32 %s11, %s18
    %p130 = scmp.eq.s32.totalorder %s129, 0
    %s132 = sadd.s32 %s131, 1
    %s133 = scalar_select %p130, %s131, %s132
    %p136 = pneg %p130
    %p137 = scmp.eq.s32.totalorder %s11, 2
    %p138 = por %p136, %p137
    %p139 = scmp.ne.s32.totalorder %s131, %s134
    %p140 = scmp.eq.s32.totalorder %s11, 0
    %p141 = por %p139, %p140
    %p142 = scmp.ne.s32.totalorder %s131, %s134
    %p143 = scmp.eq.s32.totalorder %s16, 2
    %p144 = por %p142, %p143
    %p145 = scmp.ne.s32.totalorder %s134, %s135
    %p146 = scmp.eq.s32.totalorder %s16, 0
    %p147 = por %p145, %p146
    %p148 = scmp.ne.s32.totalorder %s134, %s135
    %p149 = scmp.eq.s32.totalorder %s17, 2
    %p150 = por %p148, %p149
    %p152 = scmp.ne.s32.totalorder %s135, %s151
    %p153 = scmp.eq.s32.totalorder %s17, 0
    %p154 = por %p152, %p153
    %p155 = scmp.le.s32.totalorder 1, %s11
    %p156 = scmp.lt.s32.totalorder %s11, 4
    %p157 = pnand %p155, %p156
    %p158 = pneg %p157
    // Predicated region
    $region9: #{reinforce_policy_forward.1} parent=5 // pred_check
      _
    $region10: #{reinforce_policy_forward.1} parent=5 // pred_check_branch
      %160 = sbr.rel (%p157) target = $region12
    $region11: #{reinforce_policy_forward.1} parent=5 // pred_region
      %s161 = ssub.s32 %s11, 1
      // Predicated region
      $region13: #{reinforce_policy_forward.1} parent=11 // pred_check
        %p162 = pneg %p58
      $region14: #{reinforce_policy_forward.1} parent=11 // pred_check_branch
        %164 = sbr.rel (%p162) target = $region16
      $region15: #{reinforce_policy_forward.1} parent=11 // pred_region
        _
      $region16: #{reinforce_policy_forward.1} parent=11 // pred_fallthru
        _
      // Predicated region
      $region17: #{reinforce_policy_forward.1} parent=11 // pred_check
        %p165 = pneg %p79
      $region18: #{reinforce_policy_forward.1} parent=11 // pred_check_branch
        %167 = sbr.rel (%p165) target = $region20
      $region19: #{reinforce_policy_forward.1} parent=11 // pred_region
        _
      $region20: #{reinforce_policy_forward.1} parent=11 // pred_fallthru
        _
      // Predicated region
      $region21: #{reinforce_policy_forward.1} parent=11 // pred_check
        %p168 = pneg %p100
      $region22: #{reinforce_policy_forward.1} parent=11 // pred_check_branch
        %170 = sbr.rel (%p168) target = $region24
      $region23: #{reinforce_policy_forward.1} parent=11 // pred_region
        _
      $region24: #{reinforce_policy_forward.1} parent=11 // pred_fallthru
        _
      // Predicated region
      $region25: #{reinforce_policy_forward.1} parent=11 // pred_check
        %p171 = pneg %p121
      $region26: #{reinforce_policy_forward.1} parent=11 // pred_check_branch
        %173 = sbr.rel (%p171) target = $region28
      $region27: #{reinforce_policy_forward.1} parent=11 // pred_region
        _
      $region28: #{reinforce_policy_forward.1} parent=11 // pred_fallthru
        _
    $region12: #{reinforce_policy_forward.1} parent=5 // pred_fallthru
      _
    %p174 = scmp.lt.s32.totalorder %s11, 3
    // Predicated region
    $region29: #{reinforce_policy_forward.1} parent=5 // pred_check
      %p175 = pneg %p174
    $region30: #{reinforce_policy_forward.1} parent=5 // pred_check_branch
      %177 = sbr.rel (%p175) target = $region32
    $region31: #{reinforce_policy_forward.1} parent=5 // pred_region
      // Predicated region
      $region33: #{reinforce_policy_forward.1} parent=31 // pred_check
        %p178 = pneg %p31
      $region34: #{reinforce_policy_forward.1} parent=31 // pred_check_branch
        %180 = sbr.rel (%p178) target = $region36
      $region35: #{reinforce_policy_forward.1} parent=31 // pred_region
        %p181 = scmp.lt.s32.totalorder %s11, 2
        %s182 = scalar_select %p181, %s11, 2
        %s183 = smul.addr %s182, 8
        %s184 = scalar_lea.vmem %s0, %s183
      $region36: #{reinforce_policy_forward.1} parent=31 // pred_fallthru
        _
    $region32: #{reinforce_policy_forward.1} parent=5 // pred_fallthru
      _
    %p185 = scmp.le.s32.totalorder 1, %s11
    %p186 = scmp.lt.s32.totalorder %s11, 4
    %p187 = pnand %p185, %p186
    %p188 = pneg %p187
    // Predicated region
    $region37: #{reinforce_policy_forward.1} parent=5 // pred_check
      _
    $region38: #{reinforce_policy_forward.1} parent=5 // pred_check_branch
      %190 = sbr.rel (%p187) target = $region40
    $region39: #{reinforce_policy_forward.1} parent=5 // pred_region
      %s191 = ssub.s32 %s11, 1
      %p192 = scmp.lt.s32.totalorder %s16, 2
      %s193 = scalar_select %p192, %s16, 2
      %s194 = smul.addr %s193, 8
      %s195 = scalar_lea.vmem %s0, %s194
      %p196 = pneg %p37
      %p197 = pneg %p34
      %p198 = pneg %p58
      %p199 = pneg %p55
      %p200 = pneg %p79
      %p201 = pneg %p76
      %p202 = pneg %p100
      %p203 = pneg %p97
      %p204 = pneg %p121
      %p205 = pneg %p118
      %p206 = pneg %p147
      %p207 = pneg %p144
      %p208 = scmp.lt.s32.totalorder %s16, 2
      %s209 = scalar_select %p208, %s16, 2
      %s210 = smul.addr %s209, 4
      %s211 = scalar_lea.vmem %s5, %s210
      %p212 = scmp.lt.s32.totalorder %s16, 2
      %s213 = scalar_select %p212, %s16, 2
      %s214 = smul.addr %s213, 8
      %s215 = scalar_lea.vmem %s0, %s214
      %p216 = scmp.lt.s32.totalorder %s16, 2
      %s217 = scalar_select %p216, %s16, 2
      %s218 = smul.addr %s217, 4
      %s219 = scalar_lea.vmem %s5, %s218
      %v220 = vld [vmem:[%s1] sm:$0xff]
      %v221 = vld [vmem:[%s1 + $0x8] sm:$0xff]
      %v222 = vld [vmem:[%s1 + $0x10] sm:$0xff]
      %v223 = vld [vmem:[%s1 + $0x18] sm:$0xff]
      %v224 = vld [vmem:[%s1 + $0x20] sm:$0xff]
      %v225 = vld [vmem:[%s1 + $0x28] sm:$0xff]
      %v226 = vld [vmem:[%s1 + $0x30] sm:$0xff]
      %v227 = vld [vmem:[%s1 + $0x38] sm:$0xff]
      %v228 = vld [vmem:[%s1 + $0x40] sm:$0xff]
      %v229 = vld [vmem:[%s1 + $0x48] sm:$0xff]
      %v230 = vld [vmem:[%s1 + $0x50] sm:$0xff]
      %v231 = vld [vmem:[%s1 + $0x58] sm:$0xff]
      %v232 = vld [vmem:[%s1 + $0x60] sm:$0xff]
      %v233 = vld [vmem:[%s1 + $0x68] sm:$0xff]
      %v234 = vld [vmem:[%s1 + $0x70] sm:$0xff]
      %v235 = vld [vmem:[%s1 + $0x78] sm:$0xff]
      %v236 = vld [vmem:[%s215] sm:$0xff]
      %v237 = vld [vmem:[%s2] sm:$0xff]
      %v238 = vld [vmem:[%s2 + $0x8] sm:$0xff]
      %v239 = vld [vmem:[%s2 + $0x10] sm:$0xff]
      %v240 = vld [vmem:[%s2 + $0x18] sm:$0xff]
      %v241 = vld [vmem:[%s2 + $0x20] sm:$0xff]
      %v242 = vld [vmem:[%s2 + $0x28] sm:$0xff]
      %v243 = vld [vmem:[%s2 + $0x30] sm:$0xff]
      %v244 = vld [vmem:[%s2 + $0x38] sm:$0xff]
      %v245 = vld [vmem:[%s2 + $0x40] sm:$0xff]
      %v246 = vld [vmem:[%s2 + $0x48] sm:$0xff]
      %v247 = vld [vmem:[%s2 + $0x50] sm:$0xff]
      %v248 = vld [vmem:[%s2 + $0x58] sm:$0xff]
      %v249 = vld [vmem:[%s2 + $0x60] sm:$0xff]
      %v250 = vld [vmem:[%s2 + $0x68] sm:$0xff]
      %v251 = vld [vmem:[%s2 + $0x70] sm:$0xff]
      %v252 = vld [vmem:[%s2 + $0x78] sm:$0xff]
      %254 = vset.pattern.permute.xlu0 0
      %255 = vperm.xlu0 %254, %v237
      %v256 = vpop.permute.xlu0 %255
      %259 = vset.pattern.permute.xlu0 0
      %260 = vperm.xlu0 %259, %v238
      %v261 = vpop.permute.xlu0 %260
      %264 = vset.pattern.permute.xlu0 0
      %265 = vperm.xlu0 %264, %v239
      %v266 = vpop.permute.xlu0 %265
      %269 = vset.pattern.permute.xlu0 0
      %270 = vperm.xlu0 %269, %v240
      %v271 = vpop.permute.xlu0 %270
      %274 = vset.pattern.permute.xlu0 0
      %275 = vperm.xlu0 %274, %v241
      %v276 = vpop.permute.xlu0 %275
      %279 = vset.pattern.permute.xlu0 0
      %280 = vperm.xlu0 %279, %v242
      %v281 = vpop.permute.xlu0 %280
      %284 = vset.pattern.permute.xlu0 0
      %285 = vperm.xlu0 %284, %v243
      %v286 = vpop.permute.xlu0 %285
      %289 = vset.pattern.permute.xlu0 0
      %290 = vperm.xlu0 %289, %v244
      %v291 = vpop.permute.xlu0 %290
      %294 = vset.pattern.permute.xlu0 0
      %295 = vperm.xlu0 %294, %v245
      %v296 = vpop.permute.xlu0 %295
      %299 = vset.pattern.permute.xlu0 0
      %300 = vperm.xlu0 %299, %v246
      %v301 = vpop.permute.xlu0 %300
      %304 = vset.pattern.permute.xlu0 0
      %305 = vperm.xlu0 %304, %v247
      %v306 = vpop.permute.xlu0 %305
      %309 = vset.pattern.permute.xlu0 0
      %310 = vperm.xlu0 %309, %v248
      %v311 = vpop.permute.xlu0 %310
      %314 = vset.pattern.permute.xlu0 0
      %315 = vperm.xlu0 %314, %v249
      %v316 = vpop.permute.xlu0 %315
      %319 = vset.pattern.permute.xlu0 0
      %320 = vperm.xlu0 %319, %v250
      %v321 = vpop.permute.xlu0 %320
      %324 = vset.pattern.permute.xlu0 0
      %325 = vperm.xlu0 %324, %v251
      %v326 = vpop.permute.xlu0 %325
      %329 = vset.pattern.permute.xlu0 0
      %330 = vperm.xlu0 %329, %v252
      %v331 = vpop.permute.xlu0 %330
      %vm333 = vcmask 64512
      %v335 = vsel %vm333, %v220, 0
      %v338 = vsel %vm333, %v221, 0
      %v341 = vsel %vm333, %v222, 0
      %v344 = vsel %vm333, %v223, 0
      %v347 = vsel %vm333, %v224, 0
      %v350 = vsel %vm333, %v225, 0
      %v353 = vsel %vm333, %v226, 0
      %v356 = vsel %vm333, %v227, 0
      %v359 = vsel %vm333, %v228, 0
      %v362 = vsel %vm333, %v229, 0
      %v365 = vsel %vm333, %v230, 0
      %v368 = vsel %vm333, %v231, 0
      %v371 = vsel %vm333, %v232, 0
      %v374 = vsel %vm333, %v233, 0
      %v377 = vsel %vm333, %v234, 0
      %v380 = vsel %vm333, %v235, 0
      %382 = vmatprep.subr.mxu0 0.0
      %383 = vmatpush1.msra.mxu0 %v236
      %384 = vmatprep.subr.mxu0 0.0
      %385 = vmatpush1.msra.mxu0 0.0
      %386 = vmatprep.subr.mxu0 0.0
      %387 = vmatpush1.msra.mxu0 0.0
      %388 = vmatprep.subr.mxu0 0.0
      %389 = vmatpush1.msra.mxu0 0.0
      %390 = vmatprep.subr.mxu0 0.0
      %391 = vmatpush1.msra.mxu0 0.0
      %392 = vmatprep.subr.mxu0 0.0
      %393 = vmatpush1.msra.mxu0 0.0
      %394 = vmatprep.subr.mxu0 0.0
      %395 = vmatpush1.msra.mxu0 0.0
      %396 = vmatprep.subr.mxu0 0.0
      %397 = vmatpush1.msra.mxu0 0.0
      %398 = vmatprep.subr.mxu0 0.0
      %399 = vmatpush1.msra.mxu0 0.0
      %400 = vmatprep.subr.mxu0 0.0
      %401 = vmatpush1.msra.mxu0 0.0
      %402 = vmatprep.subr.mxu0 0.0
      %403 = vmatpush1.msra.mxu0 0.0
      %404 = vmatprep.subr.mxu0 0.0
      %405 = vmatpush1.msra.mxu0 0.0
      %406 = vmatprep.subr.mxu0 0.0
      %407 = vmatpush1.msra.mxu0 0.0
      %408 = vmatprep.subr.mxu0 0.0
      %409 = vmatpush1.msra.mxu0 0.0
      %410 = vmatprep.subr.mxu0 0.0
      %411 = vmatpush1.msra.mxu0 0.0
      %412 = vmatprep.subr.mxu0 0.0
      %413 = vmatpush1.msra.mxu0 0.0
      %414 = vmatprep.subr.mxu0 0.0
      %415 = vmatpush1.msra.mxu0 0.0
      %416 = vmatprep.subr.mxu0 0.0
      %417 = vmatpush1.msra.mxu0 0.0
      %418 = vmatprep.subr.mxu0 0.0
      %419 = vmatpush1.msra.mxu0 0.0
      %420 = vmatprep.subr.mxu0 0.0
      %421 = vmatpush1.msra.mxu0 0.0
      %422 = vmatprep.subr.mxu0 0.0
      %423 = vmatpush1.msra.mxu0 0.0
      %424 = vmatprep.subr.mxu0 0.0
      %425 = vmatpush1.msra.mxu0 0.0
      %426 = vmatprep.subr.mxu0 0.0
      %427 = vmatpush1.msra.mxu0 0.0
      %428 = vmatprep.subr.mxu0 0.0
      %429 = vmatpush1.msra.mxu0 0.0
      %430 = vmatprep.subr.mxu0 0.0
      %431 = vmatpush1.msra.mxu0 0.0
      %432 = vmatprep.subr.mxu0 0.0
      %433 = vmatpush1.msra.mxu0 0.0
      %434 = vmatprep.subr.mxu0 0.0
      %435 = vmatpush1.msra.mxu0 0.0
      %436 = vmatprep.subr.mxu0 0.0
      %437 = vmatpush1.msra.mxu0 0.0
      %438 = vmatprep.subr.mxu0 0.0
      %439 = vmatpush1.msra.mxu0 0.0
      %440 = vmatprep.subr.mxu0 0.0
      %441 = vmatpush1.msra.mxu0 0.0
      %442 = vmatprep.subr.mxu0 0.0
      %443 = vmatpush1.msra.mxu0 0.0
      %444 = vmatprep.subr.mxu0 0.0
      %445 = vmatpush1.msra.mxu0 0.0
      %446 = vmatprep.mubr.f32.mxu0 0.0
      %447 = vmatmul.mubr.f32.gmra.mrb[0].mxu0 %v335
      %v448 = vpop.f32.mrb[0].mxu0
      %v449 = vadd.f32 %v256, %v448
      %v450 = vpop.f32.mrb[0].mxu0
      %451 = vmatprep.mubr.f32.mxu0 0.0
      %452 = vmatmul.mubr.f32.gmra.mrb[0].mxu0 %v338
      %v453 = vpop.f32.mrb[0].mxu0
      %v454 = vadd.f32 %v261, %v453
      %v455 = vpop.f32.mrb[0].mxu0
      %456 = vmatprep.mubr.f32.mxu0 0.0
      %457 = vmatmul.mubr.f32.gmra.mrb[0].mxu0 %v341
      %v458 = vpop.f32.mrb[0].mxu0
      %v459 = vadd.f32 %v266, %v458
      %v460 = vpop.f32.mrb[0].mxu0
      %461 = vmatprep.mubr.f32.mxu0 0.0
      %462 = vmatmul.mubr.f32.gmra.mrb[0].mxu0 %v344
      %v463 = vpop.f32.mrb[0].mxu0
      %v464 = vadd.f32 %v271, %v463
      %v465 = vpop.f32.mrb[0].mxu0
      %466 = vmatprep.mubr.f32.mxu0 0.0
      %467 = vmatmul.mubr.f32.gmra.mrb[0].mxu0 %v347
      %v468 = vpop.f32.mrb[0].mxu0
      %v469 = vadd.f32 %v276, %v468
      %v470 = vpop.f32.mrb[0].mxu0
      %471 = vmatprep.mubr.f32.mxu0 0.0
      %472 = vmatmul.mubr.f32.gmra.mrb[0].mxu0 %v350
      %v473 = vpop.f32.mrb[0].mxu0
      %v474 = vadd.f32 %v281, %v473
      %v475 = vpop.f32.mrb[0].mxu0
      %476 = vmatprep.mubr.f32.mxu0 0.0
      %477 = vmatmul.mubr.f32.gmra.mrb[0].mxu0 %v353
      %v478 = vpop.f32.mrb[0].mxu0
      %v479 = vadd.f32 %v286, %v478
      %v480 = vpop.f32.mrb[0].mxu0
      %481 = vmatprep.mubr.f32.mxu0 0.0
      %482 = vmatmul.mubr.f32.gmra.mrb[0].mxu0 %v356
      %v483 = vpop.f32.mrb[0].mxu0
      %v484 = vadd.f32 %v291, %v483
      %v485 = vpop.f32.mrb[0].mxu0
      %486 = vmatprep.mubr.f32.mxu0 0.0
      %487 = vmatmul.mubr.f32.gmra.mrb[0].mxu0 %v359
      %v488 = vpop.f32.mrb[0].mxu0
      %v489 = vadd.f32 %v296, %v488
      %v490 = vpop.f32.mrb[0].mxu0
      %491 = vmatprep.mubr.f32.mxu0 0.0
      %492 = vmatmul.mubr.f32.gmra.mrb[0].mxu0 %v362
      %v493 = vpop.f32.mrb[0].mxu0
      %v494 = vadd.f32 %v301, %v493
      %v495 = vpop.f32.mrb[0].mxu0
      %496 = vmatprep.mubr.f32.mxu0 0.0
      %497 = vmatmul.mubr.f32.gmra.mrb[0].mxu0 %v365
      %v498 = vpop.f32.mrb[0].mxu0
      %v499 = vadd.f32 %v306, %v498
      %v500 = vpop.f32.mrb[0].mxu0
      %501 = vmatprep.mubr.f32.mxu0 0.0
      %502 = vmatmul.mubr.f32.gmra.mrb[0].mxu0 %v368
      %v503 = vpop.f32.mrb[0].mxu0
      %v504 = vadd.f32 %v311, %v503
      %v505 = vpop.f32.mrb[0].mxu0
      %506 = vmatprep.mubr.f32.mxu0 0.0
      %507 = vmatmul.mubr.f32.gmra.mrb[0].mxu0 %v371
      %v508 = vpop.f32.mrb[0].mxu0
      %v509 = vadd.f32 %v316, %v508
      %v510 = vpop.f32.mrb[0].mxu0
      %511 = vmatprep.mubr.f32.mxu0 0.0
      %512 = vmatmul.mubr.f32.gmra.mrb[0].mxu0 %v374
      %v513 = vpop.f32.mrb[0].mxu0
      %v514 = vadd.f32 %v321, %v513
      %v515 = vpop.f32.mrb[0].mxu0
      %516 = vmatprep.mubr.f32.mxu0 0.0
      %517 = vmatmul.mubr.f32.gmra.mrb[0].mxu0 %v377
      %v518 = vpop.f32.mrb[0].mxu0
      %v519 = vadd.f32 %v326, %v518
      %v520 = vpop.f32.mrb[0].mxu0
      %521 = vmatprep.mubr.f32.mxu0 0.0
      %522 = vmatmul.mubr.f32.gmra.mrb[0].mxu0 %v380
      %v523 = vpop.f32.mrb[0].mxu0
      %v524 = vadd.f32 %v331, %v523
      %v525 = vpop.f32.mrb[0].mxu0
      %526 = vdwg.mxu0
      %v527 = vmax.f32 %v449, 0.0
      %v528 = vmax.f32 %v454, 0.0
      %v529 = vmax.f32 %v459, 0.0
      %v530 = vmax.f32 %v464, 0.0
      %v531 = vmax.f32 %v469, 0.0
      %v532 = vmax.f32 %v474, 0.0
      %v533 = vmax.f32 %v479, 0.0
      %v534 = vmax.f32 %v484, 0.0
      %v535 = vmax.f32 %v489, 0.0
      %v536 = vmax.f32 %v494, 0.0
      %v537 = vmax.f32 %v499, 0.0
      %v538 = vmax.f32 %v504, 0.0
      %v539 = vmax.f32 %v509, 0.0
      %v540 = vmax.f32 %v514, 0.0
      %v541 = vmax.f32 %v519, 0.0
      %v542 = vmax.f32 %v524, 0.0
      %v543 = vld [vmem:[%s3] sm:$0xf]
      %v544 = vld [vmem:[%s4] sm:$0xf]
      %546 = vset.pattern.permute.xlu0 0
      %547 = vperm.xlu0 %546, %v544
      %v548 = vpop.permute.xlu0 %547
      %550 = vmatprep.subr.mxu0 0.0
      %551 = vmatpush1.msra.mxu0 %v527
      %552 = vmatprep.subr.mxu0 0.0
      %553 = vmatpush1.msra.mxu0 %v528
      %554 = vmatprep.subr.mxu0 0.0
      %555 = vmatpush1.msra.mxu0 %v529
      %556 = vmatprep.subr.mxu0 0.0
      %557 = vmatpush1.msra.mxu0 %v530
      %558 = vmatprep.subr.mxu0 0.0
      %559 = vmatpush1.msra.mxu0 %v531
      %560 = vmatprep.subr.mxu0 0.0
      %561 = vmatpush1.msra.mxu0 %v532
      %562 = vmatprep.subr.mxu0 0.0
      %563 = vmatpush1.msra.mxu0 %v533
      %564 = vmatprep.subr.mxu0 0.0
      %565 = vmatpush1.msra.mxu0 %v534
      %566 = vmatprep.subr.mxu0 0.0
      %567 = vmatpush1.msra.mxu0 %v535
      %568 = vmatprep.subr.mxu0 0.0
      %569 = vmatpush1.msra.mxu0 %v536
      %570 = vmatprep.subr.mxu0 0.0
      %571 = vmatpush1.msra.mxu0 %v537
      %572 = vmatprep.subr.mxu0 0.0
      %573 = vmatpush1.msra.mxu0 %v538
      %574 = vmatprep.subr.mxu0 0.0
      %575 = vmatpush1.msra.mxu0 %v539
      %576 = vmatprep.subr.mxu0 0.0
      %577 = vmatpush1.msra.mxu0 %v540
      %578 = vmatprep.subr.mxu0 0.0
      %579 = vmatpush1.msra.mxu0 %v541
      %580 = vmatprep.subr.mxu0 0.0
      %581 = vmatpush1.msra.mxu0 %v542
      %582 = vmatprep.subr.mxu0 0.0
      %583 = vmatpush1.msra.mxu0 0.0
      %584 = vmatprep.subr.mxu0 0.0
      %585 = vmatpush1.msra.mxu0 0.0
      %586 = vmatprep.subr.mxu0 0.0
      %587 = vmatpush1.msra.mxu0 0.0
      %588 = vmatprep.subr.mxu0 0.0
      %589 = vmatpush1.msra.mxu0 0.0
      %590 = vmatprep.subr.mxu0 0.0
      %591 = vmatpush1.msra.mxu0 0.0
      %592 = vmatprep.subr.mxu0 0.0
      %593 = vmatpush1.msra.mxu0 0.0
      %594 = vmatprep.subr.mxu0 0.0
      %595 = vmatpush1.msra.mxu0 0.0
      %596 = vmatprep.subr.mxu0 0.0
      %597 = vmatpush1.msra.mxu0 0.0
      %598 = vmatprep.subr.mxu0 0.0
      %599 = vmatpush1.msra.mxu0 0.0
      %600 = vmatprep.subr.mxu0 0.0
      %601 = vmatpush1.msra.mxu0 0.0
      %602 = vmatprep.subr.mxu0 0.0
      %603 = vmatpush1.msra.mxu0 0.0
      %604 = vmatprep.subr.mxu0 0.0
      %605 = vmatpush1.msra.mxu0 0.0
      %606 = vmatprep.subr.mxu0 0.0
      %607 = vmatpush1.msra.mxu0 0.0
      %608 = vmatprep.subr.mxu0 0.0
      %609 = vmatpush1.msra.mxu0 0.0
      %610 = vmatprep.subr.mxu0 0.0
      %611 = vmatpush1.msra.mxu0 0.0
      %612 = vmatprep.subr.mxu0 0.0
      %613 = vmatpush1.msra.mxu0 0.0
      %614 = vmatprep.mubr.f32.mxu0 0.0
      %615 = vmatmul.mubr.f32.gmra.mrb[0].mxu0 %v543
      %v616 = vpop.f32.mrb[0].mxu0
      %v617 = vadd.f32 %v548, %v616
      %v618 = vpop.f32.mrb[0].mxu0
      %619 = vdwg.mxu0
      %vm620 = vcmask 1043456
      %v621 = vsel %vm620, %v617, -inf
      %v622 = vrot.slane %v621, 4
      %v623 = vmax.f32 %v621, %v622
      %v624 = vrot.slane %v623, 2
      %v625 = vmax.f32 %v623, %v624
      %v626 = vrot.slane %v625, 1
      %v627 = vmax.f32 %v625, %v626
      %v628 = vsub.f32 %v617, %v627
      %v629 = vmul.f32 %v628, 1.442695
      %v630 = vpow.pop %v629
      %v631 = vsel %vm620, %v630, 0.0
      %v632 = vrot.slane %v631, 4
      %v633 = vadd.f32 %v631, %v632
      %v634 = vrot.slane %v633, 2
      %v635 = vadd.f32 %v633, %v634
      %v636 = vrot.slane %v635, 1
      %v637 = vadd.f32 %v635, %v636
      %v638 = vrcp.pop %v637
      %v639 = vmul.f32 %v630, %v638
      %640 = vst [vmem:[%s219] sm:$0xf] %v639
      %p641 = scmp.lt.s32.totalorder %s16, 2
      %s642 = scalar_select %p641, %s16, 2
      %s643 = smul.addr %s642, 4
      %s644 = scalar_lea.vmem %s5, %s643
      // Predicated region
      $region41: #{reinforce_policy_forward.1} parent=39 // pred_check
        %p645 = pneg %p144
      $region42: #{reinforce_policy_forward.1} parent=39 // pred_check_branch
        %647 = sbr.rel (%p645) target = $region44
      $region43: #{reinforce_policy_forward.1} parent=39 // pred_region
        _
      $region44: #{reinforce_policy_forward.1} parent=39 // pred_fallthru
        _
    $region40: #{reinforce_policy_forward.1} parent=5 // pred_fallthru
      _
    %p648 = scmp.le.s32.totalorder 2, %s11
    // Predicated region
    $region45: #{reinforce_policy_forward.1} parent=5 // pred_check
      %p649 = pneg %p648
    $region46: #{reinforce_policy_forward.1} parent=5 // pred_check_branch
      %651 = sbr.rel (%p649) target = $region48
    $region47: #{reinforce_policy_forward.1} parent=5 // pred_region
      %s652 = ssub.s32 %s11, 2
      // Predicated region
      $region49: #{reinforce_policy_forward.1} parent=47 // pred_check
        %p653 = pneg %p150
      $region50: #{reinforce_policy_forward.1} parent=47 // pred_check_branch
        %655 = sbr.rel (%p653) target = $region52
      $region51: #{reinforce_policy_forward.1} parent=47 // pred_region
        %p656 = scmp.lt.s32.totalorder %s17, 2
        %s657 = scalar_select %p656, %s17, 2
        %s658 = smul.addr %s657, 4
        %s659 = scalar_lea.vmem %s5, %s658
      $region52: #{reinforce_policy_forward.1} parent=47 // pred_fallthru
        _
    $region48: #{reinforce_policy_forward.1} parent=5 // pred_fallthru
      _
  $region6: #{reinforce_policy_forward.1} parent=0 // loop_footer
    %s15 = sadd.s32 1, %s11
  $region7: #{reinforce_policy_forward.1} parent=0 // loop_footer_branch
    %10 = sbr.rel target = $region3
  $region8: #{reinforce_policy_forward.1} parent=0 // loop_exit
    _

</llo_original>
